<compile_context>
chip_gen: v6e
topology: v6e:2x2x1
jax: 0.10.0
libtpu: 0.0.40
codegen_flags: <defaults>
</compile_context>

<pallas_src>
import functools

import jax
import jax.numpy as jnp
from jax.experimental import pallas as pl
from jax.experimental.pallas import tpu as pltpu


def _nll_pick_kernel(scores_ref, idx_ref, out_ref):
    """Gather scores[b, idx[b]] via compare+select; per-row lane sum -> (tb, 1)."""
    s = scores_ref[...]                                     # (tb, C) native dtype
    idx = idx_ref[...]                                      # (tb, 1) int32
    tb, C = s.shape
    col = jax.lax.broadcasted_iota(jnp.int32, (tb, C), 1)
    picked = jnp.where(col == idx, s, jnp.zeros_like(s))    # 1 cmp + 1 select
    # Exactly one nonzero per row -> native-dtype lane sum is exact; cast only
    # the (tb, 1) per-row partial to f32.
    out_ref[...] = jnp.sum(picked, axis=-1, keepdims=True).astype(jnp.float32)


def _round_up(x, m):
    return (x + m - 1) // m * m


def _nll_from_indices_xla(scores, idx, num_classes):
    picked = jnp.take_along_axis(
        scores.astype(jnp.float32), idx[:, None].astype(jnp.int32), axis=1)
    return -(jnp.sum(picked) / jnp.float32(scores.shape[0])) * jnp.float32(num_classes)


def nll_loss(scores, targets, *, tile_rows=None, force_pallas=False):
    """NLLLoss.forward.

    scores:  (B, C) log-probabilities.
    targets: (B, C) one-hot / soft targets (or (B,) integer class indices).
    Returns a scalar f32 == F.nll_loss(scores, argmax(targets), 'mean') * C.
    """
    assert scores.ndim == 2
    B, C = scores.shape

    # torch: `_, idx = targets.max(dim=1)` -> first-max index; jnp.argmax matches.
    if targets.ndim == 1:
        idx = targets.astype(jnp.int32)
    else:
        assert targets.shape == scores.shape
        idx = jnp.argmax(targets, axis=1).astype(jnp.int32)

    itemsize = jnp.dtype(scores.dtype).itemsize

    # Small-C dispatch: with < 128 classes the 128-lane vregs / DMAs are mostly
    # wasted; a fused XLA reduction wins at these sizes.
    if C < 128 and not force_pallas:
        return _nll_from_indices_xla(scores, idx, C)

    sublane_mult = max(8, 32 // itemsize)      # 8 (f32) / 16 (bf16) / 32 (int8)

    if tile_rows is None:
        # ~8 MiB of scores per grid step (double-buffered -> 16 MiB) amortizes the
        # ~0.35 us per-step overhead even at v7x HBM rates ...
        target_block_bytes = 8 * 1024 * 1024
        tile_rows = max(
            sublane_mult,
            (target_block_bytes // max(1, C * itemsize)) // sublane_mult * sublane_mult,
        )
        # ... but keep >= ~4 grid blocks whenever B allows it so the "parallel"
        # grid axis can be sharded across both v7x TensorCores.
        per_core_cap = max(sublane_mult, _round_up(pl.cdiv(B, 4), sublane_mult))
        tile_rows = min(tile_rows, per_core_cap)
    tile_rows = min(tile_rows, _round_up(B, sublane_mult))
    if B <= sublane_mult:
        tile_rows = B                           # single full-extent block

    num_blocks = pl.cdiv(B, tile_rows)
    out_rows = num_blocks * tile_rows

    idx2 = idx.reshape(B, 1)                    # tiny (B, 1) int32 side input

    bytes_accessed = scores.size * itemsize + B * 4 + out_rows * 4
    cost = pl.CostEstimate(flops=2 * B * C, transcendentals=0,
                           bytes_accessed=bytes_accessed)

    per_row = pl.pallas_call(
        _nll_pick_kernel,
        out_shape=jax.ShapeDtypeStruct((out_rows, 1), jnp.float32),
        grid_spec=pltpu.PrefetchScalarGridSpec(
            num_scalar_prefetch=0,
            grid=(num_blocks,),
            in_specs=[
                pl.BlockSpec((tile_rows, C), lambda i: (i, 0)),   # scores
                pl.BlockSpec((tile_rows, 1), lambda i: (i, 0)),   # class indices
            ],
            out_specs=pl.BlockSpec((tile_rows, 1), lambda i: (i, 0)),
        ),
        compiler_params=pltpu.CompilerParams(
            dimension_semantics=("parallel",),   # no cross-step state -> megacore OK
            vmem_limit_bytes=48 * 1024 * 1024,
        ),
        cost_estimate=cost,
    )(scores, idx2)

    # Overhang rows of the last partial block are garbage; slice before summing.
    total = jnp.sum(per_row[:B, 0])
    # F.nll_loss(..., reduction='mean') * C, with the negation folded in here.
    return -(total / jnp.float32(B)) * jnp.float32(C)


def _reference(scores, targets):
    idx = jnp.argmax(targets, axis=1)
    picked = jnp.take_along_axis(scores.astype(jnp.float32), idx[:, None], axis=1)
    return -jnp.mean(picked) * jnp.float32(targets.shape[1])


if __name__ == "__main__":
    key = jax.random.PRNGKey(0)
    B, C = 16, 256   # small batch, lane-dense class count (answer vocab)

    k1, k2 = jax.random.split(key)
    logits = jax.random.normal(k1, (B, C), dtype=jnp.float32)
    scores = jax.nn.log_softmax(logits, axis=-1)             # NLLLoss expects log-probs
    cls = jax.random.randint(k2, (B,), 0, C)
    targets = jax.nn.one_hot(cls, C, dtype=jnp.float32)      # one-hot targets

    loss = jax.block_until_ready(nll_loss(scores, targets))  # Pallas path (C >= 128)
    ref = jax.block_until_ready(_reference(scores, targets))

    assert jnp.allclose(loss, ref, rtol=1e-5, atol=1e-5), (loss, ref)
    print("KERNEL_OK")
</pallas_src>

<mosaic_0001>
module attributes {stable_mosaic.version = 11 : i64} {
  func.func @_nll_pick_kernel(%arg0: i32, %arg1: memref<8x256xf32, #tpu.memory_space<vmem>>, %arg2: memref<8x1xi32, #tpu.memory_space<vmem>>, %arg3: memref<8x1xf32, #tpu.memory_space<vmem>>) attributes {dimension_semantics = [#tpu.dimension_semantics<parallel>], iteration_bounds = array<i64: 2>, scalar_prefetch = 0 : i64, scratch_operands = 0 : i64, tpu.core_type = #tpu.core_type<tc>, window_params = [{transform_indices = @transform_0, window_bounds = array<i64: 8, 256>}, {transform_indices = @transform_1, window_bounds = array<i64: 8, 1>}, {transform_indices = @transform_2, window_bounds = array<i64: 8, 1>}]} {
    %c0 = arith.constant 0 : index
    %c0_0 = arith.constant 0 : index
    %0 = vector.load %arg1[%c0, %c0_0] : memref<8x256xf32, #tpu.memory_space<vmem>>, vector<8x256xf32>
    %c0_1 = arith.constant 0 : index
    %c0_2 = arith.constant 0 : index
    %1 = vector.load %arg2[%c0_1, %c0_2] : memref<8x1xi32, #tpu.memory_space<vmem>>, vector<8x1xi32>
    %2 = tpu.iota {dimensions = array<i32: 1>} : vector<8x256xi32>
    %3 = vector.broadcast %1 : vector<8x1xi32> to vector<8x256xi32>
    %4 = arith.cmpi eq, %2, %3 : vector<8x256xi32>
    %cst = arith.constant 0.000000e+00 : f32
    %5 = vector.broadcast %cst : f32 to vector<8x256xf32>
    %6 = arith.select %4, %0, %5 : vector<8x256xi1>, vector<8x256xf32>
    %cst_3 = arith.constant dense<0.000000e+00> : vector<8xf32>
    %7 = vector.multi_reduction <add>, %6, %cst_3 [1] : vector<8x256xf32> to vector<8xf32>
    %8 = vector.shape_cast %7 : vector<8xf32> to vector<8x1xf32>
    %c0_4 = arith.constant 0 : index
    %c0_5 = arith.constant 0 : index
    %9 = vector.load %arg3[%c0_4, %c0_5] : memref<8x1xf32, #tpu.memory_space<vmem>>, vector<8x1xf32>
    tpu.vector_store %arg3[%c0_4, %c0_5], %8 {strides = array<i32>} : memref<8x1xf32, #tpu.memory_space<vmem>>, vector<8x1xf32>,
    return
  }
  func.func @transform_0(%arg0: i32) -> (i32, i32) {
    %c0_i32 = arith.constant 0 : i32
    %c0_i32_0 = arith.constant 0 : i32
    return %arg0, %c0_i32 : i32, i32
  }
  func.func @transform_1(%arg0: i32) -> (i32, i32) {
    %c0_i32 = arith.constant 0 : i32
    %c0_i32_0 = arith.constant 0 : i32
    return %arg0, %c0_i32 : i32, i32
  }
  func.func @transform_2(%arg0: i32) -> (i32, i32) {
    %c0_i32 = arith.constant 0 : i32
    %c0_i32_0 = arith.constant 0 : i32
    return %arg0, %c0_i32 : i32, i32
  }
}

</mosaic_0001>

<llo_original>
// kernel: tpu_custom_call.1
$region0: #{tpu_custom_call.1}
  #allocation0 [shape = 'u32[]', space=smem, size = 0x4, offset = 0x4, fixed_abs, tag = 'smem constant byte address 0x4 - core index']
  #allocation1 [shape = 'u32[144,128]{1,0:T(1,128)}', space=vmem, size = 0x12000, scoped, tag = 'internal scratch']
  %s0 = inlined_call_operand.hbm [shape: f32[16,256], index: 0, kind: input, shape index: {}]
  %s1 = inlined_call_operand.vmem [shape: s32[16,1], index: 1, kind: input, shape index: {}]
  %s2 = inlined_call_operand.vmem [shape: f32[16,1], index: 2, kind: output, shape index: {}]
  %s3 = sld [smem:[#allocation0]]
  $region45: #{tpu_custom_call.1} parent=0
    _
  %s5 = ssub.s32 1, %s3
  %s6 = scalar_select 0, %s5, %s3
  $region1: #{tpu_custom_call.1} parent=0
    #allocation2 [shape = 'u8[16384]{0}', space=vmem, size = 0x4000, scoped, tag = 'input window, operand 0']
    #allocation3 [shape = 's32[2]{0}', space=sflag, size = 0x8, scoped, tag = 'scoped memory for tpu_custom_call.1']
    %7 = vsyncpa [#allocation3], 0
    %s8 = scalar_lea.sflag [#allocation3], 1
    %9 = vsyncpa %s8, 0
    loop: start=0, step=1, limit=4
    $region2: #{tpu_custom_call.1} parent=1 // loop_pre_header
      _
    $region3: #{tpu_custom_call.1} parent=1 // loop_header
      %s11 = sphi 0, %s15
      %p12 = scmp.ge.s32.totalorder %s11, 4
      %s21 = sphi 0, %s23
      %s24 = sphi 0, %s21
      %s25 = sphi 0, %s24
      %s41 = sphi 0, %s25
      %s47 = sphi 0, %s49
      %s50 = sphi 0, %s47
      %s51 = sphi 0, %s50
      %s67 = sphi 0, %s51
      %s73 = sphi 0, %s75
      %s76 = sphi 0, %s73
      %s77 = sphi 0, %s76
      %s93 = sphi 0, %s77
    $region4: #{tpu_custom_call.1} parent=1 // loop_header_branch
      %14 = sbr.rel (%p12) target = $region8
    $region5: #{tpu_custom_call.1} parent=1 // loop_body
      %s16 = ssub.s32 %s11, 1
      %s17 = ssub.s32 %s11, 2
      %s18 = sadd.s32 %s11, 1
      %s19 = ssub.s32 %s11, %s18
      %p20 = scmp.eq.s32.totalorder %s19, 0
      %s22 = sadd.s32 %s21, 1
      %s23 = scalar_select %p20, %s21, %s22
      %p26 = pneg %p20
      %p27 = scmp.eq.s32.totalorder %s11, 1
      %p28 = por %p26, %p27
      %p29 = scmp.ne.s32.totalorder %s21, %s24
      %p30 = scmp.eq.s32.totalorder %s11, 0
      %p31 = por %p29, %p30
      %p32 = scmp.ne.s32.totalorder %s21, %s24
      %p33 = scmp.eq.s32.totalorder %s16, 1
      %p34 = por %p32, %p33
      %p35 = scmp.ne.s32.totalorder %s24, %s25
      %p36 = scmp.eq.s32.totalorder %s16, 0
      %p37 = por %p35, %p36
      %p38 = scmp.ne.s32.totalorder %s24, %s25
      %p39 = scmp.eq.s32.totalorder %s17, 1
      %p40 = por %p38, %p39
      %p42 = scmp.ne.s32.totalorder %s25, %s41
      %p43 = scmp.eq.s32.totalorder %s17, 0
      %p44 = por %p42, %p43
      %s45 = ssub.s32 %s11, %s18
      %p46 = scmp.eq.s32.totalorder %s45, 0
      %s48 = sadd.s32 %s47, 1
      %s49 = scalar_select %p46, %s47, %s48
      %p52 = pneg %p46
      %p53 = scmp.eq.s32.totalorder %s11, 1
      %p54 = por %p52, %p53
      %p55 = scmp.ne.s32.totalorder %s47, %s50
      %p56 = scmp.eq.s32.totalorder %s11, 0
      %p57 = por %p55, %p56
      %p58 = scmp.ne.s32.totalorder %s47, %s50
      %p59 = scmp.eq.s32.totalorder %s16, 1
      %p60 = por %p58, %p59
      %p61 = scmp.ne.s32.totalorder %s50, %s51
      %p62 = scmp.eq.s32.totalorder %s16, 0
      %p63 = por %p61, %p62
      %p64 = scmp.ne.s32.totalorder %s50, %s51
      %p65 = scmp.eq.s32.totalorder %s17, 1
      %p66 = por %p64, %p65
      %p68 = scmp.ne.s32.totalorder %s51, %s67
      %p69 = scmp.eq.s32.totalorder %s17, 0
      %p70 = por %p68, %p69
      %s71 = ssub.s32 %s11, %s18
      %p72 = scmp.eq.s32.totalorder %s71, 0
      %s74 = sadd.s32 %s73, 1
      %s75 = scalar_select %p72, %s73, %s74
      %p78 = pneg %p72
      %p79 = scmp.eq.s32.totalorder %s11, 1
      %p80 = por %p78, %p79
      %p81 = scmp.ne.s32.totalorder %s73, %s76
      %p82 = scmp.eq.s32.totalorder %s11, 0
      %p83 = por %p81, %p82
      %p84 = scmp.ne.s32.totalorder %s73, %s76
      %p85 = scmp.eq.s32.totalorder %s16, 1
      %p86 = por %p84, %p85
      %p87 = scmp.ne.s32.totalorder %s76, %s77
      %p88 = scmp.eq.s32.totalorder %s16, 0
      %p89 = por %p87, %p88
      %p90 = scmp.ne.s32.totalorder %s76, %s77
      %p91 = scmp.eq.s32.totalorder %s17, 1
      %p92 = por %p90, %p91
      %p94 = scmp.ne.s32.totalorder %s77, %s93
      %p95 = scmp.eq.s32.totalorder %s17, 0
      %p96 = por %p94, %p95
      %p97 = scmp.le.s32.totalorder 1, %s11
      %p98 = scmp.lt.s32.totalorder %s11, 3
      %p99 = pnand %p97, %p98
      %p100 = pneg %p99
      // Predicated region
      $region9: #{tpu_custom_call.1} parent=5 // pred_check
        _
      $region10: #{tpu_custom_call.1} parent=5 // pred_check_branch
        %102 = sbr.rel (%p99) target = $region12
      $region11: #{tpu_custom_call.1} parent=5 // pred_region
        %s103 = ssub.s32 %s11, 1
      $region12: #{tpu_custom_call.1} parent=5 // pred_fallthru
        _
      %p104 = scmp.lt.s32.totalorder %s11, 2
      // Predicated region
      $region13: #{tpu_custom_call.1} parent=5 // pred_check
        %p105 = pneg %p104
      $region14: #{tpu_custom_call.1} parent=5 // pred_check_branch
        %107 = sbr.rel (%p105) target = $region16
      $region15: #{tpu_custom_call.1} parent=5 // pred_region
        // Predicated region
        $region17: #{tpu_custom_call.1} parent=15 // pred_check
          %p108 = pneg %p31
        $region18: #{tpu_custom_call.1} parent=15 // pred_check_branch
          %110 = sbr.rel (%p108) target = $region20
        $region19: #{tpu_custom_call.1} parent=15 // pred_region
          %s111 = sand.u32 %s21, 1
          %s112 = scalar_lea.sflag [#allocation3], %s111
          %s113 = sand.u32 %s21, 1
          %s114 = smul.addr %s113, 16
          %s115 = scalar_lea.vmem [#allocation2], %s114
          %s117 = ssub.s32 256, 256
          %118 = vsyncadd %s112, %s117
          %s119 = smul.addr %s11, 2
          %s120 = smul.addr %s119, 128
          %s121 = scalar_lea.hbm %s0, %s120
          %s123 = sshll.u32 %s115, 4
          %s124 = int_to_ptr.vmem [resolvable:$true] %s123
          %126 = dma.hbm_to_vmem [thread:$0]  %s121, 256, %s124, %s112
        $region20: #{tpu_custom_call.1} parent=15 // pred_fallthru
          _
        // Predicated region
        $region21: #{tpu_custom_call.1} parent=15 // pred_check
          %p127 = pneg %p57
        $region22: #{tpu_custom_call.1} parent=15 // pred_check_branch
          %129 = sbr.rel (%p127) target = $region24
        $region23: #{tpu_custom_call.1} parent=15 // pred_region
          %p130 = scmp.lt.s32.totalorder %s11, 1
          %s131 = scalar_select %p130, %s11, 1
          %s132 = smul.addr %s131, 8
          %s133 = scalar_lea.vmem %s1, %s132
        $region24: #{tpu_custom_call.1} parent=15 // pred_fallthru
          _
      $region16: #{tpu_custom_call.1} parent=5 // pred_fallthru
        _
      %p134 = scmp.le.s32.totalorder 1, %s11
      %p135 = scmp.lt.s32.totalorder %s11, 3
      %p136 = pnand %p134, %p135
      %p137 = pneg %p136
      // Predicated region
      $region25: #{tpu_custom_call.1} parent=5 // pred_check
        _
      $region26: #{tpu_custom_call.1} parent=5 // pred_check_branch
        %139 = sbr.rel (%p136) target = $region28
      $region27: #{tpu_custom_call.1} parent=5 // pred_region
        %s140 = ssub.s32 %s11, 1
        %s141 = sand.u32 %s24, 1
        %s142 = scalar_lea.sflag [#allocation3], %s141
        %s143 = sand.u32 %s24, 1
        %s144 = smul.addr %s143, 16
        %s145 = scalar_lea.vmem [#allocation2], %s144
        // Predicated region
        $region29: #{tpu_custom_call.1} parent=27 // pred_check
          %p146 = pneg %p37
        $region30: #{tpu_custom_call.1} parent=27 // pred_check_branch
          %148 = sbr.rel (%p146) target = $region32
        $region31: #{tpu_custom_call.1} parent=27 // pred_region
          %149 = dma.done %s142, 256
        $region32: #{tpu_custom_call.1} parent=27 // pred_fallthru
          _
        %s150 = sand.u32 %s24, 1
        %s151 = scalar_lea.sflag [#allocation3], %s150
        %s152 = sand.u32 %s24, 1
        %s153 = smul.addr %s152, 16
        %s154 = scalar_lea.vmem [#allocation2], %s153
        %p155 = pneg %p37
        %p156 = pneg %p34
        %p157 = scmp.lt.s32.totalorder %s16, 1
        %s158 = scalar_select %p157, %s16, 1
        %s159 = smul.addr %s158, 8
        %s160 = scalar_lea.vmem %s1, %s159
        %p161 = pneg %p63
        %p162 = pneg %p60
        %p163 = pneg %p89
        %p164 = pneg %p86
        %p165 = scmp.lt.s32.totalorder %s16, 1
        %s166 = scalar_select %p165, %s16, 1
        %s167 = smul.addr %s166, 8
        %s168 = scalar_lea.vmem %s2, %s167
        %p169 = scmp.lt.s32.totalorder %s16, 1
        %s170 = scalar_select %p169, %s16, 1
        %s171 = smul.addr %s170, 8
        %s172 = scalar_lea.vmem %s1, %s171
        %p173 = scmp.lt.s32.totalorder %s16, 1
        %s174 = scalar_select %p173, %s16, 1
        %s175 = smul.addr %s174, 8
        %s176 = scalar_lea.vmem %s2, %s175
        %v177 = vld [vmem:[%s145] sm:$0xff]
        %v178 = vld [vmem:[%s145 + $0x8] sm:$0xff]
        %v179 = vld [vmem:[%s172] sm:$0xff]
        %v180 = vlaneseq
        %v181 = vand.u32 %v180, 127
        %v182 = vadd.s32 %v181, 128
        %183 = vset.pattern.permute.xlu0 0
        %184 = vperm.xlu0 %183, %v179
        %v185 = vpop.permute.xlu0 %184
        %vm186 = vcmp.eq.s32.totalorder %v181, %v185
        %vm187 = vcmp.eq.s32.totalorder %v182, %v185
        %v188 = vsel %vm186, %v177, 0.0
        %v189 = vsel %vm187, %v178, 0.0
        %v190 = vadd.f32 %v188, %v189
        %191 = vadd.xlane.f32.xlu0 %v190
        %v192 = vpop.xlane.xlu0 %191
        %vm193 = vcmask 7168
        %194 = vst.msk [vmem:[%s176] sm:$0xff] %vm193, %v192
        %p195 = scmp.lt.s32.totalorder %s16, 1
        %s196 = scalar_select %p195, %s16, 1
        %s197 = smul.addr %s196, 8
        %s198 = scalar_lea.vmem %s2, %s197
        // Predicated region
        $region33: #{tpu_custom_call.1} parent=27 // pred_check
          %p199 = pneg %p86
        $region34: #{tpu_custom_call.1} parent=27 // pred_check_branch
          %201 = sbr.rel (%p199) target = $region36
        $region35: #{tpu_custom_call.1} parent=27 // pred_region
          _
        $region36: #{tpu_custom_call.1} parent=27 // pred_fallthru
          _
      $region28: #{tpu_custom_call.1} parent=5 // pred_fallthru
        _
      %p202 = scmp.le.s32.totalorder 2, %s11
      // Predicated region
      $region37: #{tpu_custom_call.1} parent=5 // pred_check
        %p203 = pneg %p202
      $region38: #{tpu_custom_call.1} parent=5 // pred_check_branch
        %205 = sbr.rel (%p203) target = $region40
      $region39: #{tpu_custom_call.1} parent=5 // pred_region
        %s206 = ssub.s32 %s11, 2
        // Predicated region
        $region41: #{tpu_custom_call.1} parent=39 // pred_check
          %p207 = pneg %p92
        $region42: #{tpu_custom_call.1} parent=39 // pred_check_branch
          %209 = sbr.rel (%p207) target = $region44
        $region43: #{tpu_custom_call.1} parent=39 // pred_region
          %p210 = scmp.lt.s32.totalorder %s17, 1
          %s211 = scalar_select %p210, %s17, 1
          %s212 = smul.addr %s211, 8
          %s213 = scalar_lea.vmem %s2, %s212
        $region44: #{tpu_custom_call.1} parent=39 // pred_fallthru
          _
      $region40: #{tpu_custom_call.1} parent=5 // pred_fallthru
        _
    $region6: #{tpu_custom_call.1} parent=1 // loop_footer
      %s15 = sadd.s32 1, %s11
    $region7: #{tpu_custom_call.1} parent=1 // loop_footer_branch
      %10 = sbr.rel target = $region3
    $region8: #{tpu_custom_call.1} parent=1 // loop_exit
      _
    %214 = vsyncpa [#allocation3], 1
    %s215 = scalar_lea.sflag [#allocation3], 1
    %216 = vsyncpa %s215, 1

</llo_original>
